<compile_context>
chip_gen: v6e
topology: v6e:2x2x1
jax: 0.10.0
libtpu: 0.0.40
codegen_flags: <defaults>
</compile_context>

<pallas_src>
import functools

import jax
import jax.numpy as jnp
from jax.experimental import pallas as pl
from jax.experimental.pallas import tpu as pltpu

ALPHA = 0.25
GAMMA = 2.0   # hard-coded; the kernel uses an explicit square instead of pow
LANE = 128
SUB = 8


def _focal_loss_kernel(n_ref, x_ref, t_ref, out_ref, *, block_rows):
    i = pl.program_id(0)
    last = pl.num_programs(0) - 1

    x = x_ref[...].astype(jnp.float32)   # logits
    t = t_ref[...].astype(jnp.float32)   # targets (type_as(inputs) in the module)

    # One transcendental: e = exp(-|x|), reused for both sigmoid and BCE.
    e = jnp.exp(-jnp.abs(x))
    r = pl.reciprocal(1.0 + e, approx=True)          # EUP slot, nearly free
    probs = jnp.where(x >= 0.0, r, e * r)            # numerically stable sigmoid
    probs = jnp.clip(probs, 1e-6, 1.0 - 1e-6)

    # binary_cross_entropy_with_logits, reduction='none' (stable form).
    ce = jnp.maximum(x, 0.0) - x * t + jnp.log1p(e)

    # Exact algebraic rewrites of the module's formulas:
    #   1 - p_t            = probs + t - 2*probs*t
    #   alpha_factor       = 0.25*t + 0.75*(1-t) = 0.75 - 0.5*t
    #   modulating_factor  = (1 - p_t) ** 2  (explicit VPU square, no EUP pow)
    one_minus_pt = probs + t - 2.0 * (probs * t)
    alpha_factor = 0.75 - 0.5 * t
    loss = alpha_factor * (one_minus_pt * one_minus_pt) * ce

    def write_partial(l):
        # Per-block partial sum into a vreg-shaped (8, 128) slab: vector adds
        # only, no cross-lane reduction, no serialized scalar accumulator.
        partial = l.reshape(block_rows // SUB, SUB, LANE).sum(axis=0)
        out_ref[...] = partial[None, :, :]

    # Interior blocks: no tail, no mask math at all.
    @pl.when(i != last)
    def _():
        write_partial(loss)

    # Last block only: build the validity mask (handles lane-row padding and the
    # partial/OOB tail) and discard invalid lanes with a select (NOT a 0/1
    # multiply — OOB garbage can be NaN/Inf and must not propagate).
    @pl.when(i == last)
    def _():
        row_ids = jax.lax.broadcasted_iota(jnp.int32, (block_rows, LANE), 0)
        lane_ids = jax.lax.broadcasted_iota(jnp.int32, (block_rows, LANE), 1)
        elem_ids = (i * block_rows + row_ids) * LANE + lane_ids
        write_partial(jnp.where(elem_ids < n_ref[0], loss, 0.0))


def focal_loss(inputs, targets, reduction="mean", block_rows=4096):
    """Sigmoid focal loss matching the PyTorch FocalLoss module (alpha=0.25, gamma=2)."""
    n_elem = inputs.size
    if n_elem >= 2**31:
        # elem_ids / the scalar-prefetch count are int32.
        raise ValueError("focal_loss kernel supports < 2**31 elements")

    x = inputs.reshape(-1)
    # Binary {0,1} targets are exact in bf16 -> 25% less HBM traffic vs f32.
    t = targets.reshape(-1).astype(jnp.bfloat16)

    # Only pad up to the next full 128-lane row (< 128 elems); validity of the
    # tail is handled in-kernel, so no full-size mask / pad copies are needed.
    rem = n_elem % LANE
    if rem:
        x = jnp.pad(x, (0, LANE - rem))
        t = jnp.pad(t, (0, LANE - rem))

    rows = x.size // LANE
    br = max(SUB, min(block_rows, rows))
    br = ((br + SUB - 1) // SUB) * SUB          # multiple of 8 sublanes
    grid_n = (rows + br - 1) // br              # partial last block allowed

    x2 = x.reshape(rows, LANE)
    t2 = t.reshape(rows, LANE)
    n_arr = jnp.array([n_elem], dtype=jnp.int32)

    in_spec = pl.BlockSpec((br, LANE), lambda i, n: (i, 0))
    out_spec = pl.BlockSpec((1, SUB, LANE), lambda i, n: (i, 0, 0))

    bytes_accessed = (x2.size * x2.dtype.itemsize
                      + t2.size * t2.dtype.itemsize
                      + grid_n * SUB * LANE * 4)
    cost = pl.CostEstimate(flops=25 * n_elem,
                           transcendentals=3 * n_elem,
                           bytes_accessed=bytes_accessed)

    partials = pl.pallas_call(
        functools.partial(_focal_loss_kernel, block_rows=br),
        out_shape=jax.ShapeDtypeStruct((grid_n, SUB, LANE), jnp.float32),
        grid_spec=pltpu.PrefetchScalarGridSpec(
            num_scalar_prefetch=1,
            grid=(grid_n,),
            in_specs=[in_spec, in_spec],
            out_specs=out_spec,
        ),
        compiler_params=pltpu.CompilerParams(
            dimension_semantics=("parallel",),   # disjoint blocks -> both v7x TCs
            vmem_limit_bytes=48 * 1024 * 1024,   # fits v7x's 64 MiB physical VMEM
        ),
        cost_estimate=cost,
    )(n_arr, x2, t2)

    total = jnp.sum(partials, dtype=jnp.float32)
    if reduction == "mean":
        return total / jnp.float32(n_elem)
    elif reduction == "sum":
        return total
    else:
        # TODO(synk): reduction='none' (per-element loss map) is not produced by
        # this partial-sum kernel; it would need a full-size elementwise output.
        raise NotImplementedError("reduction='none' not supported by this kernel")


def _focal_loss_ref(inputs, targets, alpha=ALPHA, gamma=GAMMA):
    x = inputs.astype(jnp.float32)
    t = targets.astype(jnp.float32)
    probs = jnp.clip(jax.nn.sigmoid(x), 1e-6, 1.0 - 1e-6)
    ce = jnp.maximum(x, 0.0) - x * t + jnp.log1p(jnp.exp(-jnp.abs(x)))
    p_t = probs * t + (1.0 - probs) * (1.0 - t)
    af = alpha * t + (1.0 - alpha) * (1.0 - t)
    mf = (1.0 - p_t) ** gamma
    return jnp.mean(af * mf * ce)


if __name__ == "__main__":
    key = jax.random.PRNGKey(0)
    k1, k2 = jax.random.split(key)
    # NCHW-style logits and binary targets, small shapes.
    logits = jax.random.normal(k1, (2, 4, 16, 16), dtype=jnp.float32)
    targets = (jax.random.uniform(k2, (2, 4, 16, 16)) > 0.5).astype(jnp.float32)

    out = focal_loss(logits, targets, reduction="mean")
    out = jax.block_until_ready(out)

    ref = _focal_loss_ref(logits, targets)
    # Tolerance relaxed vs v2 because the kernel uses the EUP approx reciprocal
    # for the sigmoid (per perf review); deviation is well below 1e-3 relative.
    assert jnp.allclose(out, ref, rtol=1e-3, atol=1e-6), (out, ref)

    print("KERNEL_OK")
</pallas_src>

<mosaic_0001>
module attributes {stable_mosaic.version = 11 : i64} {
  func.func @_focal_loss_kernel(%arg0: i32, %arg1: memref<1xi32, #tpu.memory_space<smem>>, %arg2: memref<16x128xf32, #tpu.memory_space<vmem>>, %arg3: memref<16x128xbf16, #tpu.memory_space<vmem>>, %arg4: memref<1x8x128xf32, #tpu.memory_space<vmem>>) attributes {dimension_semantics = [#tpu.dimension_semantics<parallel>], iteration_bounds = array<i64: 1>, scalar_prefetch = 1 : i64, scratch_operands = 0 : i64, tpu.core_type = #tpu.core_type<tc>, window_params = [{transform_indices = @transform_0, window_bounds = array<i64: 16, 128>}, {transform_indices = @transform_1, window_bounds = array<i64: 16, 128>}, {transform_indices = @transform_2, window_bounds = array<i64: 1, 8, 128>}]} {
    %c0 = arith.constant 0 : index
    %c0_0 = arith.constant 0 : index
    %0 = vector.load %arg2[%c0, %c0_0] : memref<16x128xf32, #tpu.memory_space<vmem>>, vector<16x128xf32>
    %c0_1 = arith.constant 0 : index
    %c0_2 = arith.constant 0 : index
    %1 = vector.load %arg3[%c0_1, %c0_2] : memref<16x128xbf16, #tpu.memory_space<vmem>>, vector<16x128xbf16>
    %2 = arith.extf %1 : vector<16x128xbf16> to vector<16x128xf32>
    %3 = math.absf %0 : vector<16x128xf32>
    %cst = arith.constant 0.000000e+00 : f32
    %4 = vector.broadcast %cst : f32 to vector<16x128xf32>
    %5 = arith.subf %4, %3 : vector<16x128xf32>
    %6 = math.exp %5 : vector<16x128xf32>
    %cst_3 = arith.constant 1.000000e+00 : f32
    %7 = vector.broadcast %cst_3 : f32 to vector<16x128xf32>
    %8 = arith.addf %7, %6 : vector<16x128xf32>
    %9 = tpu.reciprocal %8 {approx = true} : vector<16x128xf32> -> vector<16x128xf32>
    %cst_4 = arith.constant 0.000000e+00 : f32
    %10 = vector.broadcast %cst_4 : f32 to vector<16x128xf32>
    %11 = arith.cmpf oge, %0, %10 : vector<16x128xf32>
    %12 = arith.mulf %6, %9 : vector<16x128xf32>
    %13 = arith.select %11, %9, %12 : vector<16x128xi1>, vector<16x128xf32>
    %cst_5 = arith.constant 9.99999997E-7 : f32
    %cst_6 = arith.constant 0.999998986 : f32
    %14 = vector.broadcast %cst_5 : f32 to vector<16x128xf32>
    %15 = arith.maximumf %14, %13 : vector<16x128xf32>
    %16 = vector.broadcast %cst_6 : f32 to vector<16x128xf32>
    %17 = arith.minimumf %16, %15 : vector<16x128xf32>
    %cst_7 = arith.constant 0.000000e+00 : f32
    %18 = vector.broadcast %cst_7 : f32 to vector<16x128xf32>
    %19 = arith.maximumf %0, %18 : vector<16x128xf32>
    %20 = arith.mulf %0, %2 : vector<16x128xf32>
    %21 = arith.subf %19, %20 : vector<16x128xf32>
    %22 = math.log1p %6 : vector<16x128xf32>
    %23 = arith.addf %21, %22 : vector<16x128xf32>
    %24 = arith.addf %17, %2 : vector<16x128xf32>
    %25 = arith.mulf %17, %2 : vector<16x128xf32>
    %cst_8 = arith.constant 2.000000e+00 : f32
    %26 = vector.broadcast %cst_8 : f32 to vector<16x128xf32>
    %27 = arith.mulf %26, %25 : vector<16x128xf32>
    %28 = arith.subf %24, %27 : vector<16x128xf32>
    %cst_9 = arith.constant 5.000000e-01 : f32
    %29 = vector.broadcast %cst_9 : f32 to vector<16x128xf32>
    %30 = arith.mulf %29, %2 : vector<16x128xf32>
    %cst_10 = arith.constant 7.500000e-01 : f32
    %31 = vector.broadcast %cst_10 : f32 to vector<16x128xf32>
    %32 = arith.subf %31, %30 : vector<16x128xf32>
    %33 = arith.mulf %28, %28 : vector<16x128xf32>
    %34 = arith.mulf %32, %33 : vector<16x128xf32>
    %35 = arith.mulf %34, %23 : vector<16x128xf32>
    %c0_i32 = arith.constant 0 : i32
    %36 = arith.cmpi ne, %arg0, %c0_i32 : i32
    %37 = arith.extui %36 : i1 to i32
    %c0_i32_11 = arith.constant 0 : i32
    %38 = arith.cmpi ne, %37, %c0_i32_11 : i32
    scf.if %38 {
      %42 = vector.shape_cast %35 : vector<16x128xf32> to vector<2x8x128xf32>
      %cst_14 = arith.constant dense<0.000000e+00> : vector<8x128xf32>
      %43 = vector.multi_reduction <add>, %42, %cst_14 [0] : vector<2x8x128xf32> to vector<8x128xf32>
      %44 = vector.shape_cast %43 : vector<8x128xf32> to vector<1x8x128xf32>
      %c0_15 = arith.constant 0 : index
      %c0_16 = arith.constant 0 : index
      %c0_17 = arith.constant 0 : index
      %45 = vector.load %arg4[%c0_15, %c0_16, %c0_17] : memref<1x8x128xf32, #tpu.memory_space<vmem>>, vector<1x8x128xf32>
      tpu.vector_store %arg4[%c0_15, %c0_16, %c0_17], %44 {strides = array<i32>} : memref<1x8x128xf32, #tpu.memory_space<vmem>>, vector<1x8x128xf32>,
    } else {
    }
    %c0_i32_12 = arith.constant 0 : i32
    %39 = arith.cmpi eq, %arg0, %c0_i32_12 : i32
    %40 = arith.extui %39 : i1 to i32
    %c0_i32_13 = arith.constant 0 : i32
    %41 = arith.cmpi ne, %40, %c0_i32_13 : i32
    scf.if %41 {
      %42 = tpu.iota {dimensions = array<i32: 0>} : vector<16x128xi32>
      %43 = tpu.iota {dimensions = array<i32: 1>} : vector<16x128xi32>
      %c16_i32 = arith.constant 16 : i32
      %44 = arith.muli %arg0, %c16_i32 : i32
      %45 = vector.broadcast %44 : i32 to vector<16x128xi32>
      %46 = arith.addi %45, %42 : vector<16x128xi32>
      %c128_i32 = arith.constant 128 : i32
      %47 = vector.broadcast %c128_i32 : i32 to vector<16x128xi32>
      %48 = arith.muli %46, %47 : vector<16x128xi32>
      %49 = arith.addi %48, %43 : vector<16x128xi32>
      %c0_14 = arith.constant 0 : index
      %50 = memref.load %arg1[%c0_14] : memref<1xi32, #tpu.memory_space<smem>>
      %51 = vector.broadcast %50 : i32 to vector<16x128xi32>
      %52 = arith.cmpi slt, %49, %51 : vector<16x128xi32>
      %cst_15 = arith.constant 0.000000e+00 : f32
      %53 = vector.broadcast %cst_15 : f32 to vector<16x128xf32>
      %54 = arith.select %52, %35, %53 : vector<16x128xi1>, vector<16x128xf32>
      %55 = vector.shape_cast %54 : vector<16x128xf32> to vector<2x8x128xf32>
      %cst_16 = arith.constant dense<0.000000e+00> : vector<8x128xf32>
      %56 = vector.multi_reduction <add>, %55, %cst_16 [0] : vector<2x8x128xf32> to vector<8x128xf32>
      %57 = vector.shape_cast %56 : vector<8x128xf32> to vector<1x8x128xf32>
      %c0_17 = arith.constant 0 : index
      %c0_18 = arith.constant 0 : index
      %c0_19 = arith.constant 0 : index
      %58 = vector.load %arg4[%c0_17, %c0_18, %c0_19] : memref<1x8x128xf32, #tpu.memory_space<vmem>>, vector<1x8x128xf32>
      tpu.vector_store %arg4[%c0_17, %c0_18, %c0_19], %57 {strides = array<i32>} : memref<1x8x128xf32, #tpu.memory_space<vmem>>, vector<1x8x128xf32>,
    } else {
    }
    return
  }
  func.func @transform_0(%arg0: i32, %arg1: memref<1xi32, #tpu.memory_space<smem>>) -> (i32, i32) {
    %c0_i32 = arith.constant 0 : i32
    %c0_i32_0 = arith.constant 0 : i32
    return %arg0, %c0_i32 : i32, i32
  }
  func.func @transform_1(%arg0: i32, %arg1: memref<1xi32, #tpu.memory_space<smem>>) -> (i32, i32) {
    %c0_i32 = arith.constant 0 : i32
    %c0_i32_0 = arith.constant 0 : i32
    return %arg0, %c0_i32 : i32, i32
  }
  func.func @transform_2(%arg0: i32, %arg1: memref<1xi32, #tpu.memory_space<smem>>) -> (i32, i32, i32) {
    %c0_i32 = arith.constant 0 : i32
    %c0_i32_0 = arith.constant 0 : i32
    %c0_i32_1 = arith.constant 0 : i32
    return %arg0, %c0_i32, %c0_i32_0 : i32, i32, i32
  }
}

</mosaic_0001>

<llo_original>
// kernel: tpu_custom_call.1
$region0: #{tpu_custom_call.1}
  #allocation0 [shape = 'u32[]', space=smem, size = 0x4, offset = 0x4, fixed_abs, tag = 'smem constant byte address 0x4 - core index']
  #allocation1 [shape = 'u32[144,128]{1,0:T(1,128)}', space=vmem, size = 0x12000, scoped, tag = 'internal scratch']
  #allocation2 [shape = 's32[1]{0}', space=sflag, size = 0x4, scoped, tag = 'scoped memory for tpu_custom_call.1']
  #allocation3 [shape = 's32[1]{0:T(128)S(6)}', space=smem, size = 0x200, scoped, tag = 'prefetched SMEM operand 0']
  %s0 = inlined_call_operand.<no memory space> [shape: s32[1], index: 0, kind: input, shape index: {}]
  %s1 = inlined_call_operand.hbm [shape: f32[16,128], index: 1, kind: input, shape index: {}]
  %s2 = inlined_call_operand.hbm [shape: bf16[16,128], index: 2, kind: input, shape index: {}]
  %s3 = inlined_call_operand.hbm [shape: f32[1,8,128], index: 3, kind: output, shape index: {}]
  %s4 = sld [smem:[#allocation0]]
  $region34: #{tpu_custom_call.1} parent=0
    _
  %s6 = ssub.s32 1, %s4
  %s7 = scalar_select 0, %s6, %s4
  %8 = sst [smem:[#allocation3]] %s0
  $region1: #{tpu_custom_call.1} parent=0
    #allocation4 [shape = 'u8[8192]{0}', space=vmem, size = 0x2000, scoped, tag = 'input window, operand 1, single buffered']
    #allocation5 [shape = 's32[1]{0}', space=sflag, size = 0x4, scoped, tag = 'scoped memory for tpu_custom_call.1']
    #allocation6 [shape = 's32[1]{0}', space=sflag, size = 0x4, scoped, tag = 'scoped memory for tpu_custom_call.1']
    #allocation7 [shape = 'u8[4096]{0}', space=vmem, size = 0x1000, scoped, tag = 'input window, operand 2, single buffered']
    #allocation8 [shape = 's32[1]{0}', space=sflag, size = 0x4, scoped, tag = 'scoped memory for tpu_custom_call.1']
    #allocation9 [shape = 'u8[4096]{0}', space=vmem, size = 0x1000, scoped, tag = 'output window, operand 0, single buffered']
    %9 = vsyncpa [#allocation5], 0
    %10 = vsyncpa [#allocation8], 0
    %11 = vsyncpa [#allocation6], 0
    // Predicated region
    $region2: #{tpu_custom_call.1} parent=1 // pred_check
      _
    $region3: #{tpu_custom_call.1} parent=1 // pred_check_branch
      %13 = sbr.rel (0) target = $region5
    $region4: #{tpu_custom_call.1} parent=1 // pred_region
      %s15 = ssub.s32 256, 256
      %16 = vsyncadd [#allocation5], %s15
      %s17 = sshll.u32 [#allocation4], 4
      %s18 = int_to_ptr.vmem [resolvable:$true] %s17
      %23 = dma.hbm_to_vmem [thread:$0]  %s1, 256, %s18, [#allocation5], 128, 128, 8
    $region5: #{tpu_custom_call.1} parent=1 // pred_fallthru
      _
    // Predicated region
    $region6: #{tpu_custom_call.1} parent=1 // pred_check
      _
    $region7: #{tpu_custom_call.1} parent=1 // pred_check_branch
      %25 = sbr.rel (0) target = $region9
    $region8: #{tpu_custom_call.1} parent=1 // pred_region
      %s27 = ssub.s32 128, 128
      %28 = vsyncadd [#allocation8], %s27
      %s29 = sshll.u32 [#allocation7], 4
      %s30 = int_to_ptr.vmem [resolvable:$true] %s29
      %35 = dma.hbm_to_vmem [thread:$0]  %s2, 128, %s30, [#allocation8], 64, 64, 4
    $region9: #{tpu_custom_call.1} parent=1 // pred_fallthru
      _
    // Predicated region
    $region10: #{tpu_custom_call.1} parent=1 // pred_check
      _
    $region11: #{tpu_custom_call.1} parent=1 // pred_check_branch
      %37 = sbr.rel (0) target = $region13
    $region12: #{tpu_custom_call.1} parent=1 // pred_region
      %38 = dma.done [#allocation5], 256
    $region13: #{tpu_custom_call.1} parent=1 // pred_fallthru
      _
    // Predicated region
    $region14: #{tpu_custom_call.1} parent=1 // pred_check
      _
    $region15: #{tpu_custom_call.1} parent=1 // pred_check_branch
      %40 = sbr.rel (0) target = $region17
    $region16: #{tpu_custom_call.1} parent=1 // pred_region
      %41 = dma.done [#allocation8], 128
    $region17: #{tpu_custom_call.1} parent=1 // pred_fallthru
      _
    %v42 = vld [vmem:[#allocation4] sm:$0xff]
    %v43 = vld [vmem:[#allocation4 + $0x8] sm:$0xff]
    %v44 = vld [vmem:[#allocation7] sm:$0xf]
    %v45 = vld [vmem:[#allocation7 + $0x4] sm:$0xf]
    %v46 = vunpack.c.l.bf16 %v44
    %v47 = vunpack.c.l.bf16 %v45
    %v48 = vand.u32 2147483647, %v42
    %v49 = vand.u32 2147483647, %v43
    %v50 = vsub.f32 0.0, %v48
    %v51 = vsub.f32 0.0, %v49
    %v52 = vmul.f32 %v50, 1.442695
    %v53 = vpow.pop %v52
    %v54 = vmul.f32 %v51, 1.442695
    %v55 = vpow.pop %v54
    %v56 = vadd.f32 %v53, 1.0
    %v57 = vadd.f32 %v55, 1.0
    %v58 = vrcp.pop %v56
    %v59 = vrcp.pop %v57
    %vm60 = vcmp.ge.f32.partialorder %v42, 0.0
    %vm61 = vcmp.ge.f32.partialorder %v43, 0.0
    %v62 = vmul.f32 %v53, %v58
    %v63 = vmul.f32 %v55, %v59
    %v64 = vsel %vm60, %v58, %v62
    %v65 = vsel %vm61, %v59, %v63
    %v66 = vmax.f32 %v64, 1e-06
    %v67 = vmax.f32 %v65, 1e-06
    %v68 = vmin.f32 %v66, 0.999999
    %v69 = vmin.f32 %v67, 0.999999
    %v70 = vmax.f32 %v42, 0.0
    %v71 = vmax.f32 %v43, 0.0
    %v72 = vmul.f32 %v42, %v46
    %v73 = vmul.f32 %v43, %v47
    %v74 = vsub.f32 %v70, %v72
    %v75 = vsub.f32 %v71, %v73
    %v76 = vadd.f32 %v53, 1.0
    %v77 = vlog2.pop %v76
    %v78 = vmul.f32 %v77, 0.6931472
    %v79 = vmul.f32 -0.5, %v53
    %v80 = vadd.f32 %v79, 1.0
    %v81 = vmul.f32 %v80, %v53
    %v82 = vand.u32 2147483647, %v53
    %vm83 = vcmp.lt.f32.partialorder %v82, 0.0004427343
    %v84 = vsel %vm83, %v81, %v78
    %v85 = vadd.f32 %v55, 1.0
    %v86 = vlog2.pop %v85
    %v87 = vmul.f32 %v86, 0.6931472
    %v88 = vmul.f32 -0.5, %v55
    %v89 = vadd.f32 %v88, 1.0
    %v90 = vmul.f32 %v89, %v55
    %v91 = vand.u32 2147483647, %v55
    %vm92 = vcmp.lt.f32.partialorder %v91, 0.0004427343
    %v93 = vsel %vm92, %v90, %v87
    %v94 = vadd.f32 %v74, %v84
    %v95 = vadd.f32 %v75, %v93
    %v96 = vadd.f32 %v68, %v46
    %v97 = vadd.f32 %v69, %v47
    %v98 = vmul.f32 %v68, %v46
    %v99 = vmul.f32 %v69, %v47
    %v100 = vmul.f32 %v98, 2.0
    %v101 = vmul.f32 %v99, 2.0
    %v102 = vsub.f32 %v96, %v100
    %v103 = vsub.f32 %v97, %v101
    %v104 = vmul.f32 %v46, 0.5
    %v105 = vmul.f32 %v47, 0.5
    %v106 = vsub.f32 0.75, %v104
    %v107 = vsub.f32 0.75, %v105
    %v108 = vmul.f32 %v102, %v102
    %v109 = vmul.f32 %v103, %v103
    %v110 = vmul.f32 %v106, %v108
    %v111 = vmul.f32 %v107, %v109
    %v112 = vmul.f32 %v110, %v94
    %v113 = vmul.f32 %v111, %v95
    %p114 = scmp.ne.s32.totalorder 0, 0
    // Predicated region
    $region18: #{tpu_custom_call.1} parent=1 // pred_check
      %p115 = pneg %p114
    $region19: #{tpu_custom_call.1} parent=1 // pred_check_branch
      %117 = sbr.rel (%p115) target = $region21
    $region20: #{tpu_custom_call.1} parent=1 // pred_region
      %v118 = vadd.f32 %v112, %v113
      %119 = vst [vmem:[#allocation9] sm:$0xff] %v118
    $region21: #{tpu_custom_call.1} parent=1 // pred_fallthru
      _
    %p120 = scmp.eq.s32.totalorder 0, 0
    // Predicated region
    $region22: #{tpu_custom_call.1} parent=1 // pred_check
      %p121 = pneg %p120
    $region23: #{tpu_custom_call.1} parent=1 // pred_check_branch
      %123 = sbr.rel (%p121) target = $region25
    $region24: #{tpu_custom_call.1} parent=1 // pred_region
      %v124 = vlaneseq
      %v125 = vshrl.u32 %v124, 7
      %v126 = vadd.s32 %v125, 8
      %v127 = vlaneseq
      %v128 = vand.u32 %v127, 127
      %s129 = smul.u32 0, 16
      %v130 = vstv %s129
      %v131 = vadd.s32 %v130, %v125
      %v132 = vadd.s32 %v130, %v126
      %v133 = vmul.u32 %v131, 128
      %v134 = vmul.u32 %v132, 128
      %v135 = vadd.s32 %v133, %v128
      %v136 = vadd.s32 %v134, %v128
      %s137 = sld [smem:[#allocation3]]
      %v138 = vstv %s137
      %vm139 = vcmp.lt.s32.totalorder %v135, %v138
      %vm140 = vcmp.lt.s32.totalorder %v136, %v138
      %v141 = vsel %vm139, %v112, 0.0
      %v142 = vsel %vm140, %v113, 0.0
      %v143 = vadd.f32 %v141, %v142
      %144 = vst [vmem:[#allocation9] sm:$0xff] %v143
    $region25: #{tpu_custom_call.1} parent=1 // pred_fallthru
      _
    // Predicated region
    $region26: #{tpu_custom_call.1} parent=1 // pred_check
      _
    $region27: #{tpu_custom_call.1} parent=1 // pred_check_branch
      %146 = sbr.rel (0) target = $region29
    $region28: #{tpu_custom_call.1} parent=1 // pred_region
      %s148 = ssub.s32 128, 128
      %149 = vsyncadd [#allocation6], %s148
      %s151 = sshll.u32 [#allocation9], 4
      %s152 = int_to_ptr.vmem [resolvable:$true] %s151
      %154 = dma.vmem_to_hbm [thread:$0]  %s152, 128, %s3, [#allocation6]
    $region29: #{tpu_custom_call.1} parent=1 // pred_fallthru
      _
    // Predicated region
    $region30: #{tpu_custom_call.1} parent=1 // pred_check
      _
    $region31: #{tpu_custom_call.1} parent=1 // pred_check_branch
      %156 = sbr.rel (0) target = $region33
    $region32: #{tpu_custom_call.1} parent=1 // pred_region
      %157 = dma.done [#allocation6], 128
    $region33: #{tpu_custom_call.1} parent=1 // pred_fallthru
      _
    %158 = vsyncpa [#allocation5], 1
    %159 = vsyncpa [#allocation8], 1
    %160 = vsyncpa [#allocation6], 1

</llo_original>
